<compile_context>
chip_gen: v6e
topology: v6e:2x2x1
jax: 0.10.0
libtpu: 0.0.40
codegen_flags: <defaults>
</compile_context>

<pallas_src>
import functools

import jax
import jax.numpy as jnp
from jax.experimental import pallas as pl
from jax.experimental.pallas import tpu as pltpu


def fl_gnn_kernel(x_ref, w1_ref, b1_ref, w2_ref, b2_ref, o_ref):
    # x_ref : (tb, input_size)          streamed batch tile
    # w1_ref: (hidden, input_size)      b1_ref: (hidden, 1)
    # w2_ref: (num_classes, hidden)     b2_ref: (num_classes, 1)
    # o_ref : (num_classes, tb)         lane-dense output slab (batch on lanes)

    # Cast (if needed) in VMEM, then put batch on the lane axis.
    xt = x_ref[...].astype(w1_ref.dtype).T               # (input_size, tb)

    # fc1 on the MXU (f32 accumulate), bias + relu on the VPU.
    h = jnp.dot(w1_ref[...], xt, preferred_element_type=jnp.float32)
    h = jnp.maximum(h + b1_ref[...], 0.0)                 # (hidden, tb)

    # fc2 on the MXU.
    logits = jnp.dot(w2_ref[...], h.astype(w2_ref.dtype),
                     preferred_element_type=jnp.float32) + b2_ref[...]
    # logits: (num_classes, tb)

    # log_softmax over the class (sublane) axis — numerically stable.
    m = jnp.max(logits, axis=0, keepdims=True)
    shifted = logits - m
    lse = jnp.log(jnp.sum(jnp.exp(shifted), axis=0, keepdims=True))
    o_ref[...] = (shifted - lse).astype(o_ref.dtype)


def _round_up(n, m):
    return ((n + m - 1) // m) * m


def _pick_batch_tile(batch, block_batch):
    """Pick the per-grid-step batch tile.

    Small batches use a single full-extent block (any size is legal when the
    block equals the full dim).  Larger batches use lane-aligned tiles
    (multiples of 128 — required for the lane-dense (num_classes, batch)
    output), capped by `block_batch` and chosen so the grid has >= 4 steps
    where possible (feeds both v7x TensorCores, amortizes per-step overhead).
    """
    if batch <= 512:
        return batch
    tb = _round_up(pl.cdiv(batch, 4), 128)
    tb = min(tb, max(128, _round_up(block_batch, 128)))
    return tb


@functools.partial(jax.jit,
                   static_argnames=("block_batch", "use_bf16", "out_dtype"))
def fl_gnn_forward(x, w1, b1, w2, b2, *, block_batch=8192, use_bf16=False,
                   out_dtype=jnp.float32):
    """FL_GNN forward.

    x : (batch, input_size)                 (streamed in its native dtype)
    w1: (hidden, input_size), b1: (hidden,)        -- PyTorch fc1 layout
    w2: (num_classes, hidden), b2: (num_classes,)  -- PyTorch fc2 layout
    Returns (batch, num_classes) log-probabilities in `out_dtype`.

    On v6e/v7x, block_batch can be raised to 16384+ (still within the 32 MiB
    vmem limit set below); default 8192 also fits v5e's smaller scoped VMEM.
    """
    batch, input_size = x.shape
    hidden = w1.shape[0]
    num_classes = w2.shape[0]

    # Weights/biases are tiny and VMEM-resident: casting them here is free.
    # x is deliberately NOT cast here (that would add a full HBM round trip).
    param_dtype = jnp.bfloat16 if use_bf16 else jnp.float32
    w1c = w1.astype(param_dtype)
    w2c = w2.astype(param_dtype)
    b1c = b1.astype(jnp.float32).reshape(hidden, 1)
    b2c = b2.astype(jnp.float32).reshape(num_classes, 1)

    tb = _pick_batch_tile(batch, block_batch)
    grid = (pl.cdiv(batch, tb),)

    out_itemsize = jnp.dtype(out_dtype).itemsize
    cost = pl.CostEstimate(
        flops=2 * batch * (input_size * hidden + hidden * num_classes),
        transcendentals=batch * (num_classes + 1),  # exp per class + log per row
        bytes_accessed=(x.size * x.dtype.itemsize
                        + w1c.size * w1c.dtype.itemsize
                        + w2c.size * w2c.dtype.itemsize
                        + b1c.size * 4 + b2c.size * 4
                        + batch * num_classes * out_itemsize),
    )

    out_t = pl.pallas_call(
        fl_gnn_kernel,
        out_shape=jax.ShapeDtypeStruct((num_classes, batch), out_dtype),
        grid=grid,
        in_specs=[
            pl.BlockSpec((tb, input_size), lambda i: (i, 0)),       # x: streamed
            pl.BlockSpec((hidden, input_size), lambda i: (0, 0)),   # w1: resident
            pl.BlockSpec((hidden, 1), lambda i: (0, 0)),            # b1: resident
            pl.BlockSpec((num_classes, hidden), lambda i: (0, 0)),  # w2: resident
            pl.BlockSpec((num_classes, 1), lambda i: (0, 0)),       # b2: resident
        ],
        out_specs=pl.BlockSpec((num_classes, tb), lambda i: (0, i)),  # lane-dense
        compiler_params=pltpu.CompilerParams(
            dimension_semantics=("parallel",),   # v7x: shard batch grid over 2 TCs
            vmem_limit_bytes=32 * 1024 * 1024,   # raise v5e's 16 MiB default
        ),
        cost_estimate=cost,
    )(x, w1c, b1c, w2c, b2c)

    # Layout plumbing only: (num_classes, batch) -> (batch, num_classes).
    return out_t.T


def _init_linear(key, in_features, out_features):
    """PyTorch-style nn.Linear init; returns weight (out,in) and bias (out,)."""
    kw, kb = jax.random.split(key)
    bound = 1.0 / (in_features ** 0.5)
    w = jax.random.uniform(kw, (out_features, in_features), jnp.float32,
                           minval=-bound, maxval=bound)
    b = jax.random.uniform(kb, (out_features,), jnp.float32,
                           minval=-bound, maxval=bound)
    return w, b


def _reference(x, w1, b1, w2, b2):
    """Pure-JAX f32 reference matching the PyTorch module."""
    h = jnp.maximum(x @ w1.T + b1, 0.0)
    logits = h @ w2.T + b2
    return jax.nn.log_softmax(logits, axis=1)


if __name__ == "__main__":
    input_size, hidden, num_classes = 32, 16, 10

    key = jax.random.PRNGKey(0)
    kx, k1, k2, kx2 = jax.random.split(key, 4)
    w1, b1 = _init_linear(k1, input_size, hidden)
    w2, b2 = _init_linear(k2, hidden, num_classes)

    # --- small smoke test (single grid step, full-extent block) ---
    batch = 8
    x = jax.random.normal(kx, (batch, input_size), jnp.float32)
    out = jax.block_until_ready(fl_gnn_forward(x, w1, b1, w2, b2))
    ref = _reference(x, w1, b1, w2, b2)
    assert out.shape == (batch, num_classes)
    assert jnp.allclose(out, ref, atol=1e-4, rtol=1e-4)

    # --- multi-step grid with a ragged final block (no wrapper padding) ---
    batch2 = 2000
    x2 = jax.random.normal(kx2, (batch2, input_size), jnp.float32)
    out2 = jax.block_until_ready(
        fl_gnn_forward(x2, w1, b1, w2, b2, block_batch=512))
    ref2 = _reference(x2, w1, b1, w2, b2)
    assert out2.shape == (batch2, num_classes)
    assert jnp.allclose(out2, ref2, atol=1e-4, rtol=1e-4)

    print("KERNEL_OK")
</pallas_src>

<mosaic_0001>
module attributes {stable_mosaic.version = 11 : i64} {
  func.func @fl_gnn_kernel(%arg0: i32, %arg1: memref<8x32xf32, #tpu.memory_space<vmem>>, %arg2: memref<16x32xf32, #tpu.memory_space<vmem>>, %arg3: memref<16x1xf32, #tpu.memory_space<vmem>>, %arg4: memref<10x16xf32, #tpu.memory_space<vmem>>, %arg5: memref<10x1xf32, #tpu.memory_space<vmem>>, %arg6: memref<10x8xf32, #tpu.memory_space<vmem>>) attributes {dimension_semantics = [#tpu.dimension_semantics<parallel>], iteration_bounds = array<i64: 1>, scalar_prefetch = 0 : i64, scratch_operands = 0 : i64, tpu.core_type = #tpu.core_type<tc>, window_params = [{transform_indices = @transform_0, window_bounds = array<i64: 8, 32>}, {pipeline_mode = #tpu.pipeline_mode<synchronous>, transform_indices = @transform_1, window_bounds = array<i64: 16, 32>}, {pipeline_mode = #tpu.pipeline_mode<synchronous>, transform_indices = @transform_2, window_bounds = array<i64: 16, 1>}, {pipeline_mode = #tpu.pipeline_mode<synchronous>, transform_indices = @transform_3, window_bounds = array<i64: 10, 16>}, {pipeline_mode = #tpu.pipeline_mode<synchronous>, transform_indices = @transform_4, window_bounds = array<i64: 10, 1>}, {transform_indices = @transform_5, window_bounds = array<i64: 10, 8>}]} {
    %c0 = arith.constant 0 : index
    %c0_0 = arith.constant 0 : index
    %0 = vector.load %arg1[%c0, %c0_0] : memref<8x32xf32, #tpu.memory_space<vmem>>, vector<8x32xf32>
    %1 = tpu.transpose %0, [1, 0] : vector<8x32xf32> -> vector<32x8xf32>
    %c0_1 = arith.constant 0 : index
    %c0_2 = arith.constant 0 : index
    %2 = vector.load %arg2[%c0_1, %c0_2] : memref<16x32xf32, #tpu.memory_space<vmem>>, vector<16x32xf32>
    %cst = arith.constant dense<0.000000e+00> : vector<16x8xf32>
    %3 = tpu.matmul %2, %1, %cst {dimension_numbers = #tpu.dot_dimension_numbers<[1], [0], [0], [1], [0, 0, 1, 1], [], []>} : vector<16x32xf32>, vector<32x8xf32>, vector<16x8xf32> -> vector<16x8xf32>
    %c0_3 = arith.constant 0 : index
    %c0_4 = arith.constant 0 : index
    %4 = vector.load %arg3[%c0_3, %c0_4] : memref<16x1xf32, #tpu.memory_space<vmem>>, vector<16x1xf32>
    %5 = vector.broadcast %4 : vector<16x1xf32> to vector<16x8xf32>
    %6 = arith.addf %3, %5 : vector<16x8xf32>
    %cst_5 = arith.constant 0.000000e+00 : f32
    %7 = vector.broadcast %cst_5 : f32 to vector<16x8xf32>
    %8 = arith.maximumf %6, %7 : vector<16x8xf32>
    %c0_6 = arith.constant 0 : index
    %c0_7 = arith.constant 0 : index
    %9 = vector.load %arg4[%c0_6, %c0_7] : memref<10x16xf32, #tpu.memory_space<vmem>>, vector<10x16xf32>
    %cst_8 = arith.constant dense<0.000000e+00> : vector<10x8xf32>
    %10 = tpu.matmul %9, %8, %cst_8 {dimension_numbers = #tpu.dot_dimension_numbers<[1], [0], [0], [1], [0, 0, 1, 1], [], []>} : vector<10x16xf32>, vector<16x8xf32>, vector<10x8xf32> -> vector<10x8xf32>
    %c0_9 = arith.constant 0 : index
    %c0_10 = arith.constant 0 : index
    %11 = vector.load %arg5[%c0_9, %c0_10] : memref<10x1xf32, #tpu.memory_space<vmem>>, vector<10x1xf32>
    %12 = vector.broadcast %11 : vector<10x1xf32> to vector<10x8xf32>
    %13 = arith.addf %10, %12 : vector<10x8xf32>
    %cst_11 = arith.constant dense<0xFF800000> : vector<8xf32>
    %14 = vector.multi_reduction <maximumf>, %13, %cst_11 [0] : vector<10x8xf32> to vector<8xf32>
    %15 = vector.shape_cast %14 : vector<8xf32> to vector<1x8xf32>
    %16 = vector.broadcast %15 : vector<1x8xf32> to vector<10x8xf32>
    %17 = arith.subf %13, %16 : vector<10x8xf32>
    %18 = math.exp %17 : vector<10x8xf32>
    %cst_12 = arith.constant dense<0.000000e+00> : vector<8xf32>
    %19 = vector.multi_reduction <add>, %18, %cst_12 [0] : vector<10x8xf32> to vector<8xf32>
    %20 = vector.shape_cast %19 : vector<8xf32> to vector<1x8xf32>
    %21 = math.log %20 : vector<1x8xf32>
    %22 = vector.broadcast %21 : vector<1x8xf32> to vector<10x8xf32>
    %23 = arith.subf %17, %22 : vector<10x8xf32>
    %c0_13 = arith.constant 0 : index
    %c0_14 = arith.constant 0 : index
    %24 = vector.load %arg6[%c0_13, %c0_14] : memref<10x8xf32, #tpu.memory_space<vmem>>, vector<10x8xf32>
    tpu.vector_store %arg6[%c0_13, %c0_14], %23 {strides = array<i32>} : memref<10x8xf32, #tpu.memory_space<vmem>>, vector<10x8xf32>,
    return
  }
  func.func @transform_0(%arg0: i32) -> (i32, i32) {
    %c0_i32 = arith.constant 0 : i32
    %c0_i32_0 = arith.constant 0 : i32
    return %arg0, %c0_i32 : i32, i32
  }
  func.func @transform_1(%arg0: i32) -> (i32, i32) {
    %c0_i32 = arith.constant 0 : i32
    %c0_i32_0 = arith.constant 0 : i32
    %c0_i32_1 = arith.constant 0 : i32
    return %c0_i32, %c0_i32_0 : i32, i32
  }
  func.func @transform_2(%arg0: i32) -> (i32, i32) {
    %c0_i32 = arith.constant 0 : i32
    %c0_i32_0 = arith.constant 0 : i32
    %c0_i32_1 = arith.constant 0 : i32
    return %c0_i32, %c0_i32_0 : i32, i32
  }
  func.func @transform_3(%arg0: i32) -> (i32, i32) {
    %c0_i32 = arith.constant 0 : i32
    %c0_i32_0 = arith.constant 0 : i32
    %c0_i32_1 = arith.constant 0 : i32
    return %c0_i32, %c0_i32_0 : i32, i32
  }
  func.func @transform_4(%arg0: i32) -> (i32, i32) {
    %c0_i32 = arith.constant 0 : i32
    %c0_i32_0 = arith.constant 0 : i32
    %c0_i32_1 = arith.constant 0 : i32
    return %c0_i32, %c0_i32_0 : i32, i32
  }
  func.func @transform_5(%arg0: i32) -> (i32, i32) {
    %c0_i32 = arith.constant 0 : i32
    %c0_i32_0 = arith.constant 0 : i32
    return %c0_i32, %arg0 : i32, i32
  }
}

</mosaic_0001>

<llo_original>
// kernel: fl_gnn_forward.1
$region0: #{fl_gnn_forward.1}
  #allocation0 [shape = 'u32[]', space=smem, size = 0x4, offset = 0x4, fixed_abs, tag = 'smem constant byte address 0x4 - core index']
  #allocation1 [shape = 'u32[144,128]{1,0:T(1,128)}', space=vmem, size = 0x12000, scoped, tag = 'internal scratch']
  %s0 = inlined_call_operand.hbm [shape: f32[8,32], index: 0, kind: input, shape index: {}]
  %s1 = inlined_call_operand.vmem [shape: f32[16,32], index: 1, kind: input, shape index: {}]
  %s2 = inlined_call_operand.vmem [shape: f32[16,1], index: 2, kind: input, shape index: {}]
  %s3 = inlined_call_operand.vmem [shape: f32[10,16], index: 3, kind: input, shape index: {}]
  %s4 = inlined_call_operand.vmem [shape: f32[10,1], index: 4, kind: input, shape index: {}]
  %s5 = inlined_call_operand.vmem [shape: f32[10,8], index: 5, kind: output, shape index: {}]
  %s6 = sld [smem:[#allocation0]]
  $region34: #{fl_gnn_forward.1} parent=0
    _
  %s8 = ssub.s32 1, %s6
  %s9 = scalar_select 0, %s8, %s6
  $region1: #{fl_gnn_forward.1} parent=0
    #allocation2 [shape = 'u8[4096]{0}', space=vmem, size = 0x1000, scoped, tag = 'input window, operand 0, single buffered']
    #allocation3 [shape = 's32[1]{0}', space=sflag, size = 0x4, scoped, tag = 'scoped memory for fl_gnn_forward.1']
    %10 = vsyncpa [#allocation3], 0
    // Predicated region
    $region2: #{fl_gnn_forward.1} parent=1 // pred_check
      _
    $region3: #{fl_gnn_forward.1} parent=1 // pred_check_branch
      %12 = sbr.rel (0) target = $region5
    $region4: #{fl_gnn_forward.1} parent=1 // pred_region
      %s14 = ssub.s32 128, 128
      %15 = vsyncadd [#allocation3], %s14
      %s17 = sshll.u32 [#allocation2], 4
      %s18 = int_to_ptr.vmem [resolvable:$true] %s17
      %20 = dma.hbm_to_vmem [thread:$0]  %s0, 128, %s18, [#allocation3]
    $region5: #{fl_gnn_forward.1} parent=1 // pred_fallthru
      _
    // Predicated region
    $region6: #{fl_gnn_forward.1} parent=1 // pred_check
      _
    $region7: #{fl_gnn_forward.1} parent=1 // pred_check_branch
      %22 = sbr.rel (0) target = $region9
    $region8: #{fl_gnn_forward.1} parent=1 // pred_region
      _
    $region9: #{fl_gnn_forward.1} parent=1 // pred_fallthru
      _
    // Predicated region
    $region10: #{fl_gnn_forward.1} parent=1 // pred_check
      _
    $region11: #{fl_gnn_forward.1} parent=1 // pred_check_branch
      %24 = sbr.rel (0) target = $region13
    $region12: #{fl_gnn_forward.1} parent=1 // pred_region
      _
    $region13: #{fl_gnn_forward.1} parent=1 // pred_fallthru
      _
    // Predicated region
    $region14: #{fl_gnn_forward.1} parent=1 // pred_check
      _
    $region15: #{fl_gnn_forward.1} parent=1 // pred_check_branch
      %26 = sbr.rel (0) target = $region17
    $region16: #{fl_gnn_forward.1} parent=1 // pred_region
      _
    $region17: #{fl_gnn_forward.1} parent=1 // pred_fallthru
      _
    // Predicated region
    $region18: #{fl_gnn_forward.1} parent=1 // pred_check
      _
    $region19: #{fl_gnn_forward.1} parent=1 // pred_check_branch
      %28 = sbr.rel (0) target = $region21
    $region20: #{fl_gnn_forward.1} parent=1 // pred_region
      _
    $region21: #{fl_gnn_forward.1} parent=1 // pred_fallthru
      _
    // Predicated region
    $region22: #{fl_gnn_forward.1} parent=1 // pred_check
      _
    $region23: #{fl_gnn_forward.1} parent=1 // pred_check_branch
      %30 = sbr.rel (0) target = $region25
    $region24: #{fl_gnn_forward.1} parent=1 // pred_region
      %31 = dma.done [#allocation3], 128
    $region25: #{fl_gnn_forward.1} parent=1 // pred_fallthru
      _
    %v32 = vld [vmem:[#allocation2] sm:$0xff]
    %v33 = vld [vmem:[%s1] sm:$0xff]
    %v34 = vld [vmem:[%s1 + $0x8] sm:$0xff]
    %v35 = vld [vmem:[%s2] sm:$0xff]
    %v36 = vld [vmem:[%s2 + $0x8] sm:$0xff]
    %38 = vset.pattern.permute.xlu0 0
    %39 = vperm.xlu0 %38, %v35
    %v40 = vpop.permute.xlu0 %39
    %43 = vset.pattern.permute.xlu0 0
    %44 = vperm.xlu0 %43, %v36
    %v45 = vpop.permute.xlu0 %44
    %vm47 = vcmask 261120
    %v49 = vsel %vm47, %v33, 0
    %v52 = vsel %vm47, %v34, 0
    %v55 = vsel %vm47, %v32, 0
    %57 = vmatprep.subr.mxu0 0.0
    %58 = vmatpush1.xpose.msra.mxu0 0.0
    %59 = vmatprep.subr.mxu0 0.0
    %60 = vmatpush1.xpose.msra.mxu0 0.0
    %61 = vmatprep.subr.mxu0 0.0
    %62 = vmatpush1.xpose.msra.mxu0 0.0
    %63 = vmatprep.subr.mxu0 0.0
    %64 = vmatpush1.xpose.msra.mxu0 0.0
    %65 = vmatprep.subr.mxu0 0.0
    %66 = vmatpush1.xpose.msra.mxu0 0.0
    %67 = vmatprep.subr.mxu0 0.0
    %68 = vmatpush1.xpose.msra.mxu0 0.0
    %69 = vmatprep.subr.mxu0 0.0
    %70 = vmatpush1.xpose.msra.mxu0 0.0
    %71 = vmatprep.subr.mxu0 0.0
    %72 = vmatpush1.xpose.msra.mxu0 0.0
    %73 = vmatprep.subr.mxu0 0.0
    %74 = vmatpush1.xpose.msra.mxu0 0.0
    %75 = vmatprep.subr.mxu0 0.0
    %76 = vmatpush1.xpose.msra.mxu0 0.0
    %77 = vmatprep.subr.mxu0 0.0
    %78 = vmatpush1.xpose.msra.mxu0 0.0
    %79 = vmatprep.subr.mxu0 0.0
    %80 = vmatpush1.xpose.msra.mxu0 0.0
    %81 = vmatprep.subr.mxu0 0.0
    %82 = vmatpush1.xpose.msra.mxu0 0.0
    %83 = vmatprep.subr.mxu0 0.0
    %84 = vmatpush1.xpose.msra.mxu0 0.0
    %85 = vmatprep.subr.mxu0 0.0
    %86 = vmatpush1.xpose.msra.mxu0 0.0
    %87 = vmatprep.subr.mxu0 0.0
    %88 = vmatpush1.xpose.msra.mxu0 %v55
    %89 = vmatprep.subr.mxu0 0.0
    %90 = vmatpush2.xpose.msra.mxu0 0.0
    %91 = vmatprep.subr.mxu0 0.0
    %92 = vmatpush2.xpose.msra.mxu0 0.0
    %93 = vmatprep.subr.mxu0 0.0
    %94 = vmatpush2.xpose.msra.mxu0 0.0
    %95 = vmatprep.subr.mxu0 0.0
    %96 = vmatpush2.xpose.msra.mxu0 0.0
    %97 = vmatprep.subr.mxu0 0.0
    %98 = vmatpush2.xpose.msra.mxu0 0.0
    %99 = vmatprep.subr.mxu0 0.0
    %100 = vmatpush2.xpose.msra.mxu0 0.0
    %101 = vmatprep.subr.mxu0 0.0
    %102 = vmatpush2.xpose.msra.mxu0 0.0
    %103 = vmatprep.subr.mxu0 0.0
    %104 = vmatpush2.xpose.msra.mxu0 0.0
    %105 = vmatprep.subr.mxu0 0.0
    %106 = vmatpush2.xpose.msra.mxu0 0.0
    %107 = vmatprep.subr.mxu0 0.0
    %108 = vmatpush2.xpose.msra.mxu0 0.0
    %109 = vmatprep.subr.mxu0 0.0
    %110 = vmatpush2.xpose.msra.mxu0 0.0
    %111 = vmatprep.subr.mxu0 0.0
    %112 = vmatpush2.xpose.msra.mxu0 0.0
    %113 = vmatprep.subr.mxu0 0.0
    %114 = vmatpush2.xpose.msra.mxu0 0.0
    %115 = vmatprep.subr.mxu0 0.0
    %116 = vmatpush2.xpose.msra.mxu0 0.0
    %117 = vmatprep.subr.mxu0 0.0
    %118 = vmatpush2.xpose.msra.mxu0 0.0
    %119 = vmatprep.subr.mxu0 0.0
    %120 = vmatpush2.xpose.msra.mxu0 0.0
    %121 = vmatprep.mubr.f32.mxu0 0.0
    %122 = vmatmul.mubr.f32.gmra.mxu0 %v49
    %v123 = vpop.f32.mrf.mxu0
    %v124 = vadd.f32 %v40, %v123
    %v125 = vpop.f32.mrf.mxu0
    %126 = vmatprep.mubr.f32.mxu0 0.0
    %127 = vmatmul.mubr.f32.gmra.mxu0 %v52
    %v128 = vpop.f32.mrf.mxu0
    %v129 = vadd.f32 %v45, %v128
    %v130 = vpop.f32.mrf.mxu0
    %131 = vdwg.mxu0
    %v132 = vmax.f32 %v124, 0.0
    %v133 = vmax.f32 %v129, 0.0
    %v134 = vld [vmem:[%s3] sm:$0xff]
    %v135 = vld [vmem:[%s3 + $0x8] sm:$0x3]
    %v136 = vld [vmem:[%s4] sm:$0xff]
    %v137 = vld [vmem:[%s4 + $0x8] sm:$0x3]
    %139 = vset.pattern.permute.xlu0 0
    %140 = vperm.xlu0 %139, %v136
    %v141 = vpop.permute.xlu0 %140
    %144 = vset.pattern.permute.xlu0 0
    %145 = vperm.xlu0 %144, %v137
    %v146 = vpop.permute.xlu0 %145
    %vm148 = vcmask 130048
    %v150 = vsel %vm148, %v134, 0
    %v153 = vsel %vm148, %v135, 0
    %155 = vmatprep.subr.mxu0 0.0
    %156 = vmatpush1.msra.mxu0 0.0
    %157 = vmatprep.subr.mxu0 0.0
    %158 = vmatpush1.msra.mxu0 0.0
    %159 = vmatprep.subr.mxu0 0.0
    %160 = vmatpush1.msra.mxu0 0.0
    %161 = vmatprep.subr.mxu0 0.0
    %162 = vmatpush1.msra.mxu0 0.0
    %163 = vmatprep.subr.mxu0 0.0
    %164 = vmatpush1.msra.mxu0 0.0
    %165 = vmatprep.subr.mxu0 0.0
    %166 = vmatpush1.msra.mxu0 0.0
    %167 = vmatprep.subr.mxu0 0.0
    %168 = vmatpush1.msra.mxu0 0.0
    %169 = vmatprep.subr.mxu0 0.0
    %170 = vmatpush1.msra.mxu0 0.0
    %171 = vmatprep.subr.mxu0 0.0
    %172 = vmatpush1.msra.mxu0 0.0
    %173 = vmatprep.subr.mxu0 0.0
    %174 = vmatpush1.msra.mxu0 0.0
    %175 = vmatprep.subr.mxu0 0.0
    %176 = vmatpush1.msra.mxu0 0.0
    %177 = vmatprep.subr.mxu0 0.0
    %178 = vmatpush1.msra.mxu0 0.0
    %179 = vmatprep.subr.mxu0 0.0
    %180 = vmatpush1.msra.mxu0 0.0
    %181 = vmatprep.subr.mxu0 0.0
    %182 = vmatpush1.msra.mxu0 0.0
    %183 = vmatprep.subr.mxu0 0.0
    %184 = vmatpush1.msra.mxu0 %v133
    %185 = vmatprep.subr.mxu0 0.0
    %186 = vmatpush1.msra.mxu0 %v132
    %187 = vmatprep.subr.mxu0 0.0
    %188 = vmatpush2.msra.mxu0 0.0
    %189 = vmatprep.subr.mxu0 0.0
    %190 = vmatpush2.msra.mxu0 0.0
    %191 = vmatprep.subr.mxu0 0.0
    %192 = vmatpush2.msra.mxu0 0.0
    %193 = vmatprep.subr.mxu0 0.0
    %194 = vmatpush2.msra.mxu0 0.0
    %195 = vmatprep.subr.mxu0 0.0
    %196 = vmatpush2.msra.mxu0 0.0
    %197 = vmatprep.subr.mxu0 0.0
    %198 = vmatpush2.msra.mxu0 0.0
    %199 = vmatprep.subr.mxu0 0.0
    %200 = vmatpush2.msra.mxu0 0.0
    %201 = vmatprep.subr.mxu0 0.0
    %202 = vmatpush2.msra.mxu0 0.0
    %203 = vmatprep.subr.mxu0 0.0
    %204 = vmatpush2.msra.mxu0 0.0
    %205 = vmatprep.subr.mxu0 0.0
    %206 = vmatpush2.msra.mxu0 0.0
    %207 = vmatprep.subr.mxu0 0.0
    %208 = vmatpush2.msra.mxu0 0.0
    %209 = vmatprep.subr.mxu0 0.0
    %210 = vmatpush2.msra.mxu0 0.0
    %211 = vmatprep.subr.mxu0 0.0
    %212 = vmatpush2.msra.mxu0 0.0
    %213 = vmatprep.subr.mxu0 0.0
    %214 = vmatpush2.msra.mxu0 0.0
    %215 = vmatprep.subr.mxu0 0.0
    %216 = vmatpush2.msra.mxu0 0.0
    %217 = vmatprep.subr.mxu0 0.0
    %218 = vmatpush2.msra.mxu0 0.0
    %219 = vmatprep.mubr.f32.mxu0 0.0
    %220 = vmatmul.mubr.f32.gmra.mxu0 %v150
    %v221 = vpop.f32.mrf.mxu0
    %v222 = vadd.f32 %v141, %v221
    %v223 = vpop.f32.mrf.mxu0
    %224 = vmatprep.mubr.f32.mxu0 0.0
    %225 = vmatmul.mubr.f32.gmra.mxu0 %v153
    %v226 = vpop.f32.mrf.mxu0
    %v227 = vadd.f32 %v146, %v226
    %v228 = vpop.f32.mrf.mxu0
    %229 = vdwg.mxu0
    %vm230 = vcmask 64512
    %v231 = vsel %vm230, %v222, -inf
    %vm232 = vcmask 58368
    %v233 = vsel %vm232, %v227, -inf
    %v234 = vmax.f32 %v231, %v233
    %v235 = vrot.slane %v234, 4
    %v236 = vmax.f32 %v234, %v235
    %v237 = vrot.slane %v236, 2
    %v238 = vmax.f32 %v236, %v237
    %v239 = vrot.slane %v238, 1
    %v240 = vmax.f32 %v238, %v239
    %v241 = vsub.f32 %v222, %v240
    %v242 = vsub.f32 %v227, %v240
    %v243 = vmul.f32 %v241, 1.442695
    %v244 = vpow.pop %v243
    %v245 = vmul.f32 %v242, 1.442695
    %v246 = vpow.pop %v245
    %v247 = vsel %vm230, %v244, 0.0
    %v248 = vsel %vm232, %v246, 0.0
    %v249 = vadd.f32 %v247, %v248
    %v250 = vrot.slane %v249, 4
    %v251 = vadd.f32 %v249, %v250
    %v252 = vrot.slane %v251, 2
    %v253 = vadd.f32 %v251, %v252
    %v254 = vrot.slane %v253, 1
    %v255 = vadd.f32 %v253, %v254
    %v256 = vlog2.pop %v255
    %v257 = vmul.f32 %v256, 0.6931472
    %v258 = vsub.f32 %v241, %v257
    %v259 = vsub.f32 %v242, %v257
    %260 = vst.msk [vmem:[%s5] sm:$0xff] %vm230, %v258
    %261 = vst.msk [vmem:[%s5 + $0x8] sm:$0x3] %vm232, %v259
    // Predicated region
    $region26: #{fl_gnn_forward.1} parent=1 // pred_check
      _
    $region27: #{fl_gnn_forward.1} parent=1 // pred_check_branch
      %263 = sbr.rel (0) target = $region29
    $region28: #{fl_gnn_forward.1} parent=1 // pred_region
      _
    $region29: #{fl_gnn_forward.1} parent=1 // pred_fallthru
      _
    // Predicated region
    $region30: #{fl_gnn_forward.1} parent=1 // pred_check
      _
    $region31: #{fl_gnn_forward.1} parent=1 // pred_check_branch
      %265 = sbr.rel (0) target = $region33
    $region32: #{fl_gnn_forward.1} parent=1 // pred_region
      _
    $region33: #{fl_gnn_forward.1} parent=1 // pred_fallthru
      _
    %266 = vsyncpa [#allocation3], 1

</llo_original>
